<compile_context>
chip_gen: v7x
topology: tpu7x:2x2x1
jax: 0.10.0
libtpu: 0.0.40
codegen_flags: <defaults>
</compile_context>

<pallas_src>
import jax
import jax.numpy as jnp
from jax.experimental import pallas as pl
from jax.experimental.pallas import tpu as pltpu  # noqa: F401  (no grid/tiling needed at these shapes)

# --- small, forward-consistent shapes ---
B = 2          # batch
V_LEN = 8      # number of video frames (v_len)
Q_LEN = 8      # question length
D_MODEL = 32   # model dim (d_model)
D_INNER = 32   # inner dim of vid encoder MLP (d_inner_hid)
D_CHAR = 16    # char-feature dim
N_ANS = 16     # number of answer classes

D_QC = D_MODEL + D_CHAR   # concat(word, char) feature width = 48
D_FUS = 2 * D_MODEL       # concat(vid_pool, ques) width = 64


def _align8(x):
    return ((x + 7) // 8) * 8


# --- weight-slab layout (ONE weight DMA instead of 11 sub-KB ones) ---
R_W1 = 0                               # (D_MODEL, D_INNER)   vid MLP layer 1
R_W2 = R_W1 + _align8(D_MODEL)         # (D_INNER, D_MODEL)   vid MLP layer 2
R_WQC = R_W2 + _align8(D_INNER)        # (D_QC, 2*D_MODEL)    block-diag [wq 0; 0 wc]
R_WFUS = R_WQC + _align8(D_QC)         # (D_FUS, D_MODEL)     stacked [wv; wu]
R_WCLS = R_WFUS + _align8(D_FUS)       # (D_MODEL, N_ANS)     classifier
R_BIAS = R_WCLS + _align8(D_MODEL)     # 4 bias rows: b1, b2, bf, bcls
SLAB_ROWS = _align8(R_BIAS + 4)
SLAB_COLS = 128                        # lane-padded


def frameqa_kernel(v_ref, qwc_ref, w_ref, out_ref):
    # Single invocation: whole batch resident in VMEM, no grid-step overhead.
    v = v_ref[...]       # (B*V_LEN, D_MODEL)
    qwc = qwc_ref[...]   # (B*Q_LEN, D_MODEL + D_CHAR)

    # static slices into the packed weight slab (free)
    w1 = w_ref[R_W1:R_W1 + D_MODEL, :D_INNER]
    w2 = w_ref[R_W2:R_W2 + D_INNER, :D_MODEL]
    wqc = w_ref[R_WQC:R_WQC + D_QC, :2 * D_MODEL]
    wfus = w_ref[R_WFUS:R_WFUS + D_FUS, :D_MODEL]
    wcls = w_ref[R_WCLS:R_WCLS + D_MODEL, :N_ANS]
    b1 = w_ref[R_BIAS + 0:R_BIAS + 1, :D_INNER]
    b2 = w_ref[R_BIAS + 1:R_BIAS + 2, :D_MODEL]
    bf = w_ref[R_BIAS + 2:R_BIAS + 3, :D_MODEL]
    bcls = w_ref[R_BIAS + 3:R_BIAS + 4, :N_ANS]

    # --- vid_encoder (2-layer MLP) + residual, all B*V_LEN rows in one matmul pair ---
    h = jnp.maximum(jnp.dot(v, w1, preferred_element_type=jnp.float32) + b1, 0.0)
    vid_res = v + jnp.dot(h, w2, preferred_element_type=jnp.float32) + b2   # (B*V_LEN, D_MODEL)

    # --- word/char projection fused via block-diagonal weight (per-stream ReLU, then add) ---
    proj = jnp.maximum(jnp.dot(qwc, wqc, preferred_element_type=jnp.float32), 0.0)  # (B*Q_LEN, 2*D_MODEL)
    qcf = proj[:, :D_MODEL] + proj[:, D_MODEL:2 * D_MODEL]                          # (B*Q_LEN, D_MODEL)

    # --- per-example mean pooling (lane dim unchanged; sublane split is tile-aligned) ---
    ques = jnp.mean(qcf.reshape(B, Q_LEN, D_MODEL), axis=1)            # (B, D_MODEL)
    vid_pool = jnp.mean(vid_res.reshape(B, V_LEN, D_MODEL), axis=1)    # (B, D_MODEL)

    # --- fused fusion matmul: [vid_pool | ques] @ [wv; wu] + bf ---
    fus_in = jnp.concatenate([vid_pool, ques], axis=-1)                # (B, 2*D_MODEL)
    fus = jnp.tanh(jnp.dot(fus_in, wfus, preferred_element_type=jnp.float32) + bf)  # (B, D_MODEL)

    # --- classifier + log_softmax over answer axis (PyTorch dim=1), one (B, N_ANS) tile ---
    logits = jnp.dot(fus, wcls, preferred_element_type=jnp.float32) + bcls
    m = jnp.max(logits, axis=1, keepdims=True)
    z = logits - m
    lse = jnp.log(jnp.sum(jnp.exp(z), axis=1, keepdims=True))
    out_ref[...] = (z - lse).astype(out_ref.dtype)                     # (B, N_ANS)


def pack_params(p):
    """Pack all weights/biases into one lane-padded f32 slab (done once, host side)."""
    slab = jnp.zeros((SLAB_ROWS, SLAB_COLS), jnp.float32)

    def put(s, r, c, w):
        return s.at[r:r + w.shape[0], c:c + w.shape[1]].set(w)

    slab = put(slab, R_W1, 0, p["w1"])
    slab = put(slab, R_W2, 0, p["w2"])
    # block-diagonal word/char projection: [wq 0; 0 wc] -> (48, 64)
    slab = put(slab, R_WQC, 0, p["wq"])
    slab = put(slab, R_WQC + D_MODEL, D_MODEL, p["wc"])
    # stacked fusion weight: [wv; wu] -> (64, 32)
    slab = put(slab, R_WFUS, 0, p["wv"])
    slab = put(slab, R_WFUS + D_MODEL, 0, p["wu"])
    slab = put(slab, R_WCLS, 0, p["wcls"])
    slab = put(slab, R_BIAS + 0, 0, p["b1"])
    slab = put(slab, R_BIAS + 1, 0, p["b2"])
    slab = put(slab, R_BIAS + 2, 0, p["bf"])
    slab = put(slab, R_BIAS + 3, 0, p["bcls"])
    return slab


def frameqa_forward(v, q_w, q_c, w_slab):
    # collapse batch into rows; lane-concat word/char features for the block-diag matmul
    v2d = v.reshape(B * V_LEN, D_MODEL)
    qwc = jnp.concatenate([q_w, q_c], axis=-1).reshape(B * Q_LEN, D_QC)
    return pl.pallas_call(
        frameqa_kernel,
        out_shape=jax.ShapeDtypeStruct((B, N_ANS), jnp.float32),
        # grid=() / full-array blocks: everything fits in VMEM, one DMA per operand.
    )(v2d, qwc, w_slab)


def init_params(key):
    ks = jax.random.split(key, 11)
    s = 0.1
    return {
        "w1":   s * jax.random.normal(ks[0], (D_MODEL, D_INNER), jnp.float32),
        "b1":   s * jax.random.normal(ks[1], (1, D_INNER), jnp.float32),
        "w2":   s * jax.random.normal(ks[2], (D_INNER, D_MODEL), jnp.float32),
        "b2":   s * jax.random.normal(ks[3], (1, D_MODEL), jnp.float32),
        "wq":   s * jax.random.normal(ks[4], (D_MODEL, D_MODEL), jnp.float32),
        "wc":   s * jax.random.normal(ks[5], (D_CHAR, D_MODEL), jnp.float32),
        "wv":   s * jax.random.normal(ks[6], (D_MODEL, D_MODEL), jnp.float32),
        "wu":   s * jax.random.normal(ks[7], (D_MODEL, D_MODEL), jnp.float32),
        "bf":   s * jax.random.normal(ks[8], (1, D_MODEL), jnp.float32),
        "wcls": s * jax.random.normal(ks[9], (D_MODEL, N_ANS), jnp.float32),
        "bcls": s * jax.random.normal(ks[10], (1, N_ANS), jnp.float32),
    }


def reference_forward(v, q_w, q_c, p):
    h = jnp.maximum(v @ p["w1"] + p["b1"], 0.0)
    vid_out = h @ p["w2"] + p["b2"]
    vid_res = v + vid_out
    qf = jnp.maximum(q_w @ p["wq"], 0.0)
    cf = jnp.maximum(q_c @ p["wc"], 0.0)
    ques = jnp.mean(qf + cf, axis=1)
    vid_pool = jnp.mean(vid_res, axis=1)
    fus = jnp.tanh(vid_pool @ p["wv"] + ques @ p["wu"] + p["bf"])
    logits = fus @ p["wcls"] + p["bcls"]
    return jax.nn.log_softmax(logits, axis=1)


if __name__ == "__main__":
    key = jax.random.PRNGKey(0)
    k_v, k_qw, k_qc, k_p = jax.random.split(key, 4)

    v = jax.random.normal(k_v, (B, V_LEN, D_MODEL), jnp.float32)
    q_w = jax.random.normal(k_qw, (B, Q_LEN, D_MODEL), jnp.float32)
    q_c = jax.random.normal(k_qc, (B, Q_LEN, D_CHAR), jnp.float32)
    params = init_params(k_p)

    w_slab = jax.block_until_ready(pack_params(params))   # one-time packing

    out = frameqa_forward(v, q_w, q_c, w_slab)
    out = jax.block_until_ready(out)

    ref = reference_forward(v, q_w, q_c, params)
    assert out.shape == (B, N_ANS)
    assert jnp.allclose(out, ref, atol=1e-5, rtol=1e-5), "mismatch vs JAX reference"

    print("KERNEL_OK")
</pallas_src>

<mosaic_0001>
module attributes {stable_mosaic.version = 11 : i64} {
  func.func @frameqa_kernel(%arg0: memref<16x32xf32, #tpu.memory_space<vmem>>, %arg1: memref<16x48xf32, #tpu.memory_space<vmem>>, %arg2: memref<216x128xf32, #tpu.memory_space<vmem>>, %arg3: memref<2x16xf32, #tpu.memory_space<vmem>>) attributes {dimension_semantics = [], scalar_prefetch = 0 : i64, scratch_operands = 0 : i64, tpu.core_type = #tpu.core_type<tc>} {
    %c0 = arith.constant 0 : index
    %c0_0 = arith.constant 0 : index
    %0 = vector.load %arg0[%c0, %c0_0] : memref<16x32xf32, #tpu.memory_space<vmem>>, vector<16x32xf32>
    %c0_1 = arith.constant 0 : index
    %c0_2 = arith.constant 0 : index
    %1 = vector.load %arg1[%c0_1, %c0_2] : memref<16x48xf32, #tpu.memory_space<vmem>>, vector<16x48xf32>
    %c0_3 = arith.constant 0 : index
    %c0_4 = arith.constant 0 : index
    %2 = vector.load %arg2[%c0_3, %c0_4] : memref<216x128xf32, #tpu.memory_space<vmem>>, vector<32x32xf32>
    %c32 = arith.constant 32 : index
    %c0_5 = arith.constant 0 : index
    %3 = vector.load %arg2[%c32, %c0_5] : memref<216x128xf32, #tpu.memory_space<vmem>>, vector<32x32xf32>
    %c64 = arith.constant 64 : index
    %c0_6 = arith.constant 0 : index
    %4 = vector.load %arg2[%c64, %c0_6] : memref<216x128xf32, #tpu.memory_space<vmem>>, vector<48x64xf32>
    %c112 = arith.constant 112 : index
    %c0_7 = arith.constant 0 : index
    %5 = vector.load %arg2[%c112, %c0_7] : memref<216x128xf32, #tpu.memory_space<vmem>>, vector<64x32xf32>
    %c176 = arith.constant 176 : index
    %c0_8 = arith.constant 0 : index
    %6 = vector.load %arg2[%c176, %c0_8] : memref<216x128xf32, #tpu.memory_space<vmem>>, vector<32x16xf32>
    %c208 = arith.constant 208 : index
    %c0_9 = arith.constant 0 : index
    %7 = vector.load %arg2[%c208, %c0_9] : memref<216x128xf32, #tpu.memory_space<vmem>>, vector<1x32xf32>
    %c209 = arith.constant 209 : index
    %c0_10 = arith.constant 0 : index
    %8 = vector.load %arg2[%c209, %c0_10] : memref<216x128xf32, #tpu.memory_space<vmem>>, vector<1x32xf32>
    %c210 = arith.constant 210 : index
    %c0_11 = arith.constant 0 : index
    %9 = vector.load %arg2[%c210, %c0_11] : memref<216x128xf32, #tpu.memory_space<vmem>>, vector<1x32xf32>
    %c211 = arith.constant 211 : index
    %c0_12 = arith.constant 0 : index
    %10 = vector.load %arg2[%c211, %c0_12] : memref<216x128xf32, #tpu.memory_space<vmem>>, vector<1x16xf32>
    %cst = arith.constant dense<0.000000e+00> : vector<16x32xf32>
    %11 = tpu.matmul %0, %2, %cst {dimension_numbers = #tpu.dot_dimension_numbers<[1], [0], [0], [1], [0, 0, 1, 1], [], []>} : vector<16x32xf32>, vector<32x32xf32>, vector<16x32xf32> -> vector<16x32xf32>
    %12 = vector.broadcast %7 : vector<1x32xf32> to vector<16x32xf32>
    %13 = arith.addf %11, %12 : vector<16x32xf32>
    %cst_13 = arith.constant 0.000000e+00 : f32
    %14 = vector.broadcast %cst_13 : f32 to vector<16x32xf32>
    %15 = arith.maximumf %13, %14 : vector<16x32xf32>
    %cst_14 = arith.constant dense<0.000000e+00> : vector<16x32xf32>
    %16 = tpu.matmul %15, %3, %cst_14 {dimension_numbers = #tpu.dot_dimension_numbers<[1], [0], [0], [1], [0, 0, 1, 1], [], []>} : vector<16x32xf32>, vector<32x32xf32>, vector<16x32xf32> -> vector<16x32xf32>
    %17 = arith.addf %0, %16 : vector<16x32xf32>
    %18 = vector.broadcast %8 : vector<1x32xf32> to vector<16x32xf32>
    %19 = arith.addf %17, %18 : vector<16x32xf32>
    %cst_15 = arith.constant dense<0.000000e+00> : vector<16x64xf32>
    %20 = tpu.matmul %1, %4, %cst_15 {dimension_numbers = #tpu.dot_dimension_numbers<[1], [0], [0], [1], [0, 0, 1, 1], [], []>} : vector<16x48xf32>, vector<48x64xf32>, vector<16x64xf32> -> vector<16x64xf32>
    %cst_16 = arith.constant 0.000000e+00 : f32
    %21 = vector.broadcast %cst_16 : f32 to vector<16x64xf32>
    %22 = arith.maximumf %20, %21 : vector<16x64xf32>
    %23 = vector.extract_strided_slice %22 {offsets = [0, 0], sizes = [16, 32], strides = [1, 1]} : vector<16x64xf32> to vector<16x32xf32>
    %24 = vector.extract_strided_slice %22 {offsets = [0, 32], sizes = [16, 32], strides = [1, 1]} : vector<16x64xf32> to vector<16x32xf32>
    %25 = arith.addf %23, %24 : vector<16x32xf32>
    %26 = vector.shape_cast %25 : vector<16x32xf32> to vector<2x8x32xf32>
    %cst_17 = arith.constant dense<0.000000e+00> : vector<2x32xf32>
    %27 = vector.multi_reduction <add>, %26, %cst_17 [1] : vector<2x8x32xf32> to vector<2x32xf32>
    %cst_18 = arith.constant 8.000000e+00 : f32
    %28 = vector.broadcast %cst_18 : f32 to vector<2x32xf32>
    %29 = arith.divf %27, %28 : vector<2x32xf32>
    %30 = vector.shape_cast %19 : vector<16x32xf32> to vector<2x8x32xf32>
    %cst_19 = arith.constant dense<0.000000e+00> : vector<2x32xf32>
    %31 = vector.multi_reduction <add>, %30, %cst_19 [1] : vector<2x8x32xf32> to vector<2x32xf32>
    %cst_20 = arith.constant 8.000000e+00 : f32
    %32 = vector.broadcast %cst_20 : f32 to vector<2x32xf32>
    %33 = arith.divf %31, %32 : vector<2x32xf32>
    %34 = tpu.concatenate %33, %29 in 1 : vector<2x32xf32>, vector<2x32xf32> -> vector<2x64xf32>
    %cst_21 = arith.constant dense<0.000000e+00> : vector<2x32xf32>
    %35 = tpu.matmul %34, %5, %cst_21 {dimension_numbers = #tpu.dot_dimension_numbers<[1], [0], [0], [1], [0, 0, 1, 1], [], []>} : vector<2x64xf32>, vector<64x32xf32>, vector<2x32xf32> -> vector<2x32xf32>
    %36 = vector.broadcast %9 : vector<1x32xf32> to vector<2x32xf32>
    %37 = arith.addf %35, %36 : vector<2x32xf32>
    %38 = math.tanh %37 : vector<2x32xf32>
    %cst_22 = arith.constant dense<0.000000e+00> : vector<2x16xf32>
    %39 = tpu.matmul %38, %6, %cst_22 {dimension_numbers = #tpu.dot_dimension_numbers<[1], [0], [0], [1], [0, 0, 1, 1], [], []>} : vector<2x32xf32>, vector<32x16xf32>, vector<2x16xf32> -> vector<2x16xf32>
    %40 = vector.broadcast %10 : vector<1x16xf32> to vector<2x16xf32>
    %41 = arith.addf %39, %40 : vector<2x16xf32>
    %cst_23 = arith.constant dense<0xFF800000> : vector<2xf32>
    %42 = vector.multi_reduction <maximumf>, %41, %cst_23 [1] : vector<2x16xf32> to vector<2xf32>
    %43 = vector.shape_cast %42 : vector<2xf32> to vector<2x1xf32>
    %44 = vector.broadcast %43 : vector<2x1xf32> to vector<2x16xf32>
    %45 = arith.subf %41, %44 : vector<2x16xf32>
    %46 = math.exp %45 : vector<2x16xf32>
    %cst_24 = arith.constant dense<0.000000e+00> : vector<2xf32>
    %47 = vector.multi_reduction <add>, %46, %cst_24 [1] : vector<2x16xf32> to vector<2xf32>
    %48 = vector.shape_cast %47 : vector<2xf32> to vector<2x1xf32>
    %49 = math.log %48 : vector<2x1xf32>
    %50 = vector.broadcast %49 : vector<2x1xf32> to vector<2x16xf32>
    %51 = arith.subf %45, %50 : vector<2x16xf32>
    %c0_25 = arith.constant 0 : index
    %c0_26 = arith.constant 0 : index
    %52 = vector.load %arg3[%c0_25, %c0_26] : memref<2x16xf32, #tpu.memory_space<vmem>>, vector<2x16xf32>
    tpu.vector_store %arg3[%c0_25, %c0_26], %51 {strides = array<i32>} : memref<2x16xf32, #tpu.memory_space<vmem>>, vector<2x16xf32>,
    return
  }
}

</mosaic_0001>

<llo_original>
// kernel: tpu_custom_call.1
$region0: #{tpu_custom_call.1}
  #allocation0 [shape = 'u32[]', space=smem, size = 0x4, offset = 0x4, fixed_abs, tag = 'smem constant byte address 0x4 - core index']
  #allocation1 [shape = 'u32[144,128]{1,0:T(1,128)}', space=vmem, size = 0x12000, scoped, tag = 'internal scratch']
  %s0 = inlined_call_operand.hbm [shape: f32[16,32], index: 0, kind: input, shape index: {}]
  %s1 = inlined_call_operand.hbm [shape: f32[16,48], index: 1, kind: input, shape index: {}]
  %s2 = inlined_call_operand.hbm [shape: f32[216,128], index: 2, kind: input, shape index: {}]
  %s3 = inlined_call_operand.hbm [shape: f32[2,16], index: 3, kind: output, shape index: {}]
  %s4 = sld [smem:[#allocation0]]
  $region34: #{tpu_custom_call.1} parent=0
    _
  %s6 = ssub.s32 1, %s4
  %s7 = scalar_select 0, %s6, %s4
  $region1: #{tpu_custom_call.1} parent=0
    #allocation2 [shape = 'u8[8192]{0}', space=vmem, size = 0x2000, scoped, tag = 'input window, operand 0, single buffered']
    #allocation3 [shape = 's32[1]{0}', space=sflag, size = 0x4, scoped, tag = 'scoped memory for tpu_custom_call.1']
    #allocation4 [shape = 's32[1]{0}', space=sflag, size = 0x4, scoped, tag = 'scoped memory for tpu_custom_call.1']
    #allocation5 [shape = 'u8[8192]{0}', space=vmem, size = 0x2000, scoped, tag = 'input window, operand 1, single buffered']
    #allocation6 [shape = 's32[1]{0}', space=sflag, size = 0x4, scoped, tag = 'scoped memory for tpu_custom_call.1']
    #allocation7 [shape = 'u8[110592]{0}', space=vmem, size = 0x1b000, scoped, tag = 'input window, operand 2, single buffered']
    #allocation8 [shape = 'u8[1024]{0}', space=vmem, size = 0x400, scoped, tag = 'output window, operand 0, single buffered']
    %8 = vsyncpa [#allocation3], 0
    %9 = vsyncpa [#allocation6], 0
    %10 = vsyncpa [#allocation4], 0
    // Predicated region
    $region2: #{tpu_custom_call.1} parent=1 // pred_check
      _
    $region3: #{tpu_custom_call.1} parent=1 // pred_check_branch
      %12 = sbr.rel (0) target = $region5
    $region4: #{tpu_custom_call.1} parent=1 // pred_region
      %s14 = ssub.s32 256, 256
      %15 = vsyncadd [#allocation3], %s14
      %s16 = sshll.u32 [#allocation2], 4
      %s17 = int_to_ptr.vmem [resolvable:$true] %s16
      %22 = dma.hbm_to_vmem [thread:$0]  %s0, 256, %s17, [#allocation3], 128, 128, 8
    $region5: #{tpu_custom_call.1} parent=1 // pred_fallthru
      _
    // Predicated region
    $region6: #{tpu_custom_call.1} parent=1 // pred_check
      _
    $region7: #{tpu_custom_call.1} parent=1 // pred_check_branch
      %24 = sbr.rel (0) target = $region9
    $region8: #{tpu_custom_call.1} parent=1 // pred_region
      %s26 = ssub.s32 256, 256
      %27 = vsyncadd [#allocation6], %s26
      %s28 = sshll.u32 [#allocation5], 4
      %s29 = int_to_ptr.vmem [resolvable:$true] %s28
      %34 = dma.hbm_to_vmem [thread:$0]  %s1, 256, %s29, [#allocation6], 128, 128, 8
    $region9: #{tpu_custom_call.1} parent=1 // pred_fallthru
      _
    // Predicated region
    $region10: #{tpu_custom_call.1} parent=1 // pred_check
      _
    $region11: #{tpu_custom_call.1} parent=1 // pred_check_branch
      %36 = sbr.rel (0) target = $region13
    $region12: #{tpu_custom_call.1} parent=1 // pred_region
      %s38 = ssub.s32 3456, 3456
      %39 = vsyncadd [#allocation6], %s38
      %s40 = sshll.u32 [#allocation7], 4
      %s41 = int_to_ptr.vmem [resolvable:$true] %s40
      %46 = dma.hbm_to_vmem [thread:$0]  %s2, 3456, %s41, [#allocation6], 128, 128, 8
    $region13: #{tpu_custom_call.1} parent=1 // pred_fallthru
      _
    // Predicated region
    $region14: #{tpu_custom_call.1} parent=1 // pred_check
      _
    $region15: #{tpu_custom_call.1} parent=1 // pred_check_branch
      %48 = sbr.rel (0) target = $region17
    $region16: #{tpu_custom_call.1} parent=1 // pred_region
      %49 = dma.done [#allocation3], 256
    $region17: #{tpu_custom_call.1} parent=1 // pred_fallthru
      _
    // Predicated region
    $region18: #{tpu_custom_call.1} parent=1 // pred_check
      _
    $region19: #{tpu_custom_call.1} parent=1 // pred_check_branch
      %51 = sbr.rel (0) target = $region21
    $region20: #{tpu_custom_call.1} parent=1 // pred_region
      %52 = dma.done [#allocation6], 256
    $region21: #{tpu_custom_call.1} parent=1 // pred_fallthru
      _
    // Predicated region
    $region22: #{tpu_custom_call.1} parent=1 // pred_check
      _
    $region23: #{tpu_custom_call.1} parent=1 // pred_check_branch
      %54 = sbr.rel (0) target = $region25
    $region24: #{tpu_custom_call.1} parent=1 // pred_region
      %55 = dma.done [#allocation6], 3456
    $region25: #{tpu_custom_call.1} parent=1 // pred_fallthru
      _
    %v56 = vld [vmem:[#allocation2] sm:$0xff]
    %v57 = vld [vmem:[#allocation2 + $0x8] sm:$0xff]
    %v58 = vld [vmem:[#allocation5] sm:$0xff]
    %v59 = vld [vmem:[#allocation5 + $0x8] sm:$0xff]
    %v60 = vld [vmem:[#allocation7] sm:$0xff]
    %v61 = vld [vmem:[#allocation7 + $0x8] sm:$0xff]
    %v62 = vld [vmem:[#allocation7 + $0x10] sm:$0xff]
    %v63 = vld [vmem:[#allocation7 + $0x18] sm:$0xff]
    %v64 = vld [vmem:[#allocation7 + $0x20] sm:$0xff]
    %v65 = vld [vmem:[#allocation7 + $0x28] sm:$0xff]
    %v66 = vld [vmem:[#allocation7 + $0x30] sm:$0xff]
    %v67 = vld [vmem:[#allocation7 + $0x38] sm:$0xff]
    %v68 = vld [vmem:[#allocation7 + $0x40] sm:$0xff]
    %v69 = vld [vmem:[#allocation7 + $0x48] sm:$0xff]
    %v70 = vld [vmem:[#allocation7 + $0x50] sm:$0xff]
    %v71 = vld [vmem:[#allocation7 + $0x58] sm:$0xff]
    %v72 = vld [vmem:[#allocation7 + $0x60] sm:$0xff]
    %v73 = vld [vmem:[#allocation7 + $0x68] sm:$0xff]
    %v74 = vld [vmem:[#allocation7 + $0x70] sm:$0xff]
    %v75 = vld [vmem:[#allocation7 + $0x78] sm:$0xff]
    %v76 = vld [vmem:[#allocation7 + $0x80] sm:$0xff]
    %v77 = vld [vmem:[#allocation7 + $0x88] sm:$0xff]
    %v78 = vld [vmem:[#allocation7 + $0x90] sm:$0xff]
    %v79 = vld [vmem:[#allocation7 + $0x98] sm:$0xff]
    %v80 = vld [vmem:[#allocation7 + $0xa0] sm:$0xff]
    %v81 = vld [vmem:[#allocation7 + $0xa8] sm:$0xff]
    %v82 = vld [vmem:[#allocation7 + $0xb0] sm:$0xff]
    %v83 = vld [vmem:[#allocation7 + $0xb8] sm:$0xff]
    %v84 = vld [vmem:[#allocation7 + $0xc0] sm:$0xff]
    %v85 = vld [vmem:[#allocation7 + $0xc8] sm:$0xff]
    %v86 = vld [vmem:[#allocation7 + $0xd0] sm:$0x1]
    %v87 = vld [vmem:[#allocation7 + $0xd1] sm:$0x1]
    %v88 = vld [vmem:[#allocation7 + $0xd2] sm:$0x1]
    %v89 = vld [vmem:[#allocation7 + $0xd3] sm:$0x1]
    %v90 = vlaneseq
    %v91 = vshrl.u32 %v90, 7
    %v92 = vsub.s32 0, %v91
    %v93 = vrot.slane %v86, %v92
    %vm94 = vcmask 261120
    %v96 = vsel %vm94, %v56, 0
    %v99 = vsel %vm94, %v57, 0
    %101 = vmatprep.subr.mxu0 0.0
    %102 = vmatpush1.msra.mxu0 %v60
    %103 = vmatprep.subr.mxu0 0.0
    %104 = vmatpush1.msra.mxu0 %v61
    %105 = vmatprep.subr.mxu0 0.0
    %106 = vmatpush1.msra.mxu0 %v62
    %107 = vmatprep.subr.mxu0 0.0
    %108 = vmatpush1.msra.mxu0 %v63
    %109 = vmatprep.subr.mxu0 0.0
    %110 = vmatpush1.msra.mxu0 0.0
    %111 = vmatprep.subr.mxu0 0.0
    %112 = vmatpush1.msra.mxu0 0.0
    %113 = vmatprep.subr.mxu0 0.0
    %114 = vmatpush1.msra.mxu0 0.0
    %115 = vmatprep.subr.mxu0 0.0
    %116 = vmatpush1.msra.mxu0 0.0
    %117 = vmatprep.subr.mxu0 0.0
    %118 = vmatpush1.msra.mxu0 0.0
    %119 = vmatprep.subr.mxu0 0.0
    %120 = vmatpush1.msra.mxu0 0.0
    %121 = vmatprep.subr.mxu0 0.0
    %122 = vmatpush1.msra.mxu0 0.0
    %123 = vmatprep.subr.mxu0 0.0
    %124 = vmatpush1.msra.mxu0 0.0
    %125 = vmatprep.subr.mxu0 0.0
    %126 = vmatpush1.msra.mxu0 0.0
    %127 = vmatprep.subr.mxu0 0.0
    %128 = vmatpush1.msra.mxu0 0.0
    %129 = vmatprep.subr.mxu0 0.0
    %130 = vmatpush1.msra.mxu0 0.0
    %131 = vmatprep.subr.mxu0 0.0
    %132 = vmatpush1.msra.mxu0 0.0
    %133 = vmatprep.subr.mxu0 0.0
    %134 = vmatpush1.msra.mxu0 0.0
    %135 = vmatprep.subr.mxu0 0.0
    %136 = vmatpush1.msra.mxu0 0.0
    %137 = vmatprep.subr.mxu0 0.0
    %138 = vmatpush1.msra.mxu0 0.0
    %139 = vmatprep.subr.mxu0 0.0
    %140 = vmatpush1.msra.mxu0 0.0
    %141 = vmatprep.subr.mxu0 0.0
    %142 = vmatpush1.msra.mxu0 0.0
    %143 = vmatprep.subr.mxu0 0.0
    %144 = vmatpush1.msra.mxu0 0.0
    %145 = vmatprep.subr.mxu0 0.0
    %146 = vmatpush1.msra.mxu0 0.0
    %147 = vmatprep.subr.mxu0 0.0
    %148 = vmatpush1.msra.mxu0 0.0
    %149 = vmatprep.subr.mxu0 0.0
    %150 = vmatpush1.msra.mxu0 0.0
    %151 = vmatprep.subr.mxu0 0.0
    %152 = vmatpush1.msra.mxu0 0.0
    %153 = vmatprep.subr.mxu0 0.0
    %154 = vmatpush1.msra.mxu0 0.0
    %155 = vmatprep.subr.mxu0 0.0
    %156 = vmatpush1.msra.mxu0 0.0
    %157 = vmatprep.subr.mxu0 0.0
    %158 = vmatpush1.msra.mxu0 0.0
    %159 = vmatprep.subr.mxu0 0.0
    %160 = vmatpush1.msra.mxu0 0.0
    %161 = vmatprep.subr.mxu0 0.0
    %162 = vmatpush1.msra.mxu0 0.0
    %163 = vmatprep.subr.mxu0 0.0
    %164 = vmatpush1.msra.mxu0 0.0
    %165 = vmatprep.mubr.f32.mxu0 0.0
    %166 = vmatmul.mubr.f32.gmra.mrb[0].mxu0 %v96
    %v167 = vpop.f32.mrb[0].mxu0
    %v168 = vadd.f32 %v93, %v167
    %v169 = vpop.f32.mrb[0].mxu0
    %170 = vmatprep.mubr.f32.mxu0 0.0
    %171 = vmatmul.mubr.f32.gmra.mrb[0].mxu0 %v99
    %v172 = vpop.f32.mrb[0].mxu0
    %v173 = vadd.f32 %v93, %v172
    %v174 = vpop.f32.mrb[0].mxu0
    %175 = vdwg.mxu0
    %v176 = vmax.f32 %v168, 0.0
    %v177 = vmax.f32 %v173, 0.0
    %v179 = vsel %vm94, %v176, 0
    %v182 = vsel %vm94, %v177, 0
    %184 = vmatprep.subr.mxu0 0.0
    %185 = vmatpush1.msra.mxu0 %v64
    %186 = vmatprep.subr.mxu0 0.0
    %187 = vmatpush1.msra.mxu0 %v65
    %188 = vmatprep.subr.mxu0 0.0
    %189 = vmatpush1.msra.mxu0 %v66
    %190 = vmatprep.subr.mxu0 0.0
    %191 = vmatpush1.msra.mxu0 %v67
    %192 = vmatprep.subr.mxu0 0.0
    %193 = vmatpush1.msra.mxu0 0.0
    %194 = vmatprep.subr.mxu0 0.0
    %195 = vmatpush1.msra.mxu0 0.0
    %196 = vmatprep.subr.mxu0 0.0
    %197 = vmatpush1.msra.mxu0 0.0
    %198 = vmatprep.subr.mxu0 0.0
    %199 = vmatpush1.msra.mxu0 0.0
    %200 = vmatprep.subr.mxu0 0.0
    %201 = vmatpush1.msra.mxu0 0.0
    %202 = vmatprep.subr.mxu0 0.0
    %203 = vmatpush1.msra.mxu0 0.0
    %204 = vmatprep.subr.mxu0 0.0
    %205 = vmatpush1.msra.mxu0 0.0
    %206 = vmatprep.subr.mxu0 0.0
    %207 = vmatpush1.msra.mxu0 0.0
    %208 = vmatprep.subr.mxu0 0.0
    %209 = vmatpush1.msra.mxu0 0.0
    %210 = vmatprep.subr.mxu0 0.0
    %211 = vmatpush1.msra.mxu0 0.0
    %212 = vmatprep.subr.mxu0 0.0
    %213 = vmatpush1.msra.mxu0 0.0
    %214 = vmatprep.subr.mxu0 0.0
    %215 = vmatpush1.msra.mxu0 0.0
    %216 = vmatprep.subr.mxu0 0.0
    %217 = vmatpush1.msra.mxu0 0.0
    %218 = vmatprep.subr.mxu0 0.0
    %219 = vmatpush1.msra.mxu0 0.0
    %220 = vmatprep.subr.mxu0 0.0
    %221 = vmatpush1.msra.mxu0 0.0
    %222 = vmatprep.subr.mxu0 0.0
    %223 = vmatpush1.msra.mxu0 0.0
    %224 = vmatprep.subr.mxu0 0.0
    %225 = vmatpush1.msra.mxu0 0.0
    %226 = vmatprep.subr.mxu0 0.0
    %227 = vmatpush1.msra.mxu0 0.0
    %228 = vmatprep.subr.mxu0 0.0
    %229 = vmatpush1.msra.mxu0 0.0
    %230 = vmatprep.subr.mxu0 0.0
    %231 = vmatpush1.msra.mxu0 0.0
    %232 = vmatprep.subr.mxu0 0.0
    %233 = vmatpush1.msra.mxu0 0.0
    %234 = vmatprep.subr.mxu0 0.0
    %235 = vmatpush1.msra.mxu0 0.0
    %236 = vmatprep.subr.mxu0 0.0
    %237 = vmatpush1.msra.mxu0 0.0
    %238 = vmatprep.subr.mxu0 0.0
    %239 = vmatpush1.msra.mxu0 0.0
    %240 = vmatprep.subr.mxu0 0.0
    %241 = vmatpush1.msra.mxu0 0.0
    %242 = vmatprep.subr.mxu0 0.0
    %243 = vmatpush1.msra.mxu0 0.0
    %244 = vmatprep.subr.mxu0 0.0
    %245 = vmatpush1.msra.mxu0 0.0
    %246 = vmatprep.subr.mxu0 0.0
    %247 = vmatpush1.msra.mxu0 0.0
    %248 = vmatprep.mubr.f32.mxu0 0.0
    %249 = vmatmul.mubr.f32.gmra.mrb[0].mxu0 %v179
    %v250 = vpop.f32.mrb[0].mxu0
    %v251 = vadd.f32 0.0, %v250
    %v252 = vpop.f32.mrb[0].mxu0
    %253 = vmatprep.mubr.f32.mxu0 0.0
    %254 = vmatmul.mubr.f32.gmra.mrb[0].mxu0 %v182
    %v255 = vpop.f32.mrb[0].mxu0
    %v256 = vadd.f32 0.0, %v255
    %v257 = vpop.f32.mrb[0].mxu0
    %258 = vdwg.mxu0
    %v259 = vadd.f32 %v56, %v251
    %v260 = vadd.f32 %v57, %v256
    %v261 = vlaneseq
    %v262 = vshrl.u32 %v261, 7
    %v263 = vsub.s32 0, %v262
    %v264 = vrot.slane %v87, %v263
    %v265 = vadd.f32 %v259, %v264
    %v266 = vadd.f32 %v260, %v264
    %vm267 = vcmask 392192
    %v269 = vsel %vm267, %v58, 0
    %v272 = vsel %vm267, %v59, 0
    %274 = vmatprep.subr.mxu0 0.0
    %275 = vmatpush1.msra.mxu0 %v68
    %276 = vmatprep.subr.mxu0 0.0
    %277 = vmatpush1.msra.mxu0 %v69
    %278 = vmatprep.subr.mxu0 0.0
    %279 = vmatpush1.msra.mxu0 %v70
    %280 = vmatprep.subr.mxu0 0.0
    %281 = vmatpush1.msra.mxu0 %v71
    %282 = vmatprep.subr.mxu0 0.0
    %283 = vmatpush1.msra.mxu0 %v72
    %284 = vmatprep.subr.mxu0 0.0
    %285 = vmatpush1.msra.mxu0 %v73
    %286 = vmatprep.subr.mxu0 0.0
    %287 = vmatpush1.msra.mxu0 0.0
    %288 = vmatprep.subr.mxu0 0.0
    %289 = vmatpush1.msra.mxu0 0.0
    %290 = vmatprep.subr.mxu0 0.0
    %291 = vmatpush1.msra.mxu0 0.0
    %292 = vmatprep.subr.mxu0 0.0
    %293 = vmatpush1.msra.mxu0 0.0
    %294 = vmatprep.subr.mxu0 0.0
    %295 = vmatpush1.msra.mxu0 0.0
    %296 = vmatprep.subr.mxu0 0.0
    %297 = vmatpush1.msra.mxu0 0.0
    %298 = vmatprep.subr.mxu0 0.0
    %299 = vmatpush1.msra.mxu0 0.0
    %300 = vmatprep.subr.mxu0 0.0
    %301 = vmatpush1.msra.mxu0 0.0
    %302 = vmatprep.subr.mxu0 0.0
    %303 = vmatpush1.msra.mxu0 0.0
    %304 = vmatprep.subr.mxu0 0.0
    %305 = vmatpush1.msra.mxu0 0.0
    %306 = vmatprep.subr.mxu0 0.0
    %307 = vmatpush1.msra.mxu0 0.0
    %308 = vmatprep.subr.mxu0 0.0
    %309 = vmatpush1.msra.mxu0 0.0
    %310 = vmatprep.subr.mxu0 0.0
    %311 = vmatpush1.msra.mxu0 0.0
    %312 = vmatprep.subr.mxu0 0.0
    %313 = vmatpush1.msra.mxu0 0.0
    %314 = vmatprep.subr.mxu0 0.0
    %315 = vmatpush1.msra.mxu0 0.0
    %316 = vmatprep.subr.mxu0 0.0
    %317 = vmatpush1.msra.mxu0 0.0
    %318 = vmatprep.subr.mxu0 0.0
    %319 = vmatpush1.msra.mxu0 0.0
    %320 = vmatprep.subr.mxu0 0.0
    %321 = vmatpush1.msra.mxu0 0.0
    %322 = vmatprep.subr.mxu0 0.0
    %323 = vmatpush1.msra.mxu0 0.0
    %324 = vmatprep.subr.mxu0 0.0
    %325 = vmatpush1.msra.mxu0 0.0
    %326 = vmatprep.subr.mxu0 0.0
    %327 = vmatpush1.msra.mxu0 0.0
    %328 = vmatprep.subr.mxu0 0.0
    %329 = vmatpush1.msra.mxu0 0.0
    %330 = vmatprep.subr.mxu0 0.0
    %331 = vmatpush1.msra.mxu0 0.0
    %332 = vmatprep.subr.mxu0 0.0
    %333 = vmatpush1.msra.mxu0 0.0
    %334 = vmatprep.subr.mxu0 0.0
    %335 = vmatpush1.msra.mxu0 0.0
    %336 = vmatprep.subr.mxu0 0.0
    %337 = vmatpush1.msra.mxu0 0.0
    %338 = vmatprep.mubr.f32.mxu0 0.0
    %339 = vmatmul.mubr.f32.gmra.mrb[0].mxu0 %v269
    %v340 = vpop.f32.mrb[0].mxu0
    %v341 = vadd.f32 0.0, %v340
    %v342 = vpop.f32.mrb[0].mxu0
    %343 = vmatprep.mubr.f32.mxu0 0.0
    %344 = vmatmul.mubr.f32.gmra.mrb[0].mxu0 %v272
    %v345 = vpop.f32.mrb[0].mxu0
    %v346 = vadd.f32 0.0, %v345
    %v347 = vpop.f32.mrb[0].mxu0
    %348 = vdwg.mxu0
    %v349 = vmax.f32 %v341, 0.0
    %v350 = vmax.f32 %v346, 0.0
    %353 = vrot.lane.b32.xlu0 %v349, 96
    %v354 = vpop.permute.xlu0 %353
    %355 = vrot.lane.b32.xlu0 %v350, 96
    %v356 = vpop.permute.xlu0 %355
    %v359 = vadd.f32 %v349, %v354
    %v360 = vadd.f32 %v350, %v356
    %v361 = vsel %vm94, %v359, 0.0
    %v362 = vrot.slane %v361, 4
    %v363 = vadd.f32 %v361, %v362
    %v364 = vrot.slane %v363, 2
    %v365 = vadd.f32 %v363, %v364
    %v366 = vrot.slane %v365, 1
    %v367 = vadd.f32 %v365, %v366
    %v368 = vsel %vm94, %v360, 0.0
    %v369 = vrot.slane %v368, 4
    %v370 = vadd.f32 %v368, %v369
    %v371 = vrot.slane %v370, 2
    %v372 = vadd.f32 %v370, %v371
    %v373 = vrot.slane %v372, 1
    %v374 = vadd.f32 %v372, %v373
    %v375 = vrcp.pop 8.0
    %v376 = vmul.f32 %v367, %v375
    %v377 = vmul.f32 %v374, %v375
    %v378 = vsel %vm94, %v265, 0.0
    %v379 = vrot.slane %v378, 4
    %v380 = vadd.f32 %v378, %v379
    %v381 = vrot.slane %v380, 2
    %v382 = vadd.f32 %v380, %v381
    %v383 = vrot.slane %v382, 1
    %v384 = vadd.f32 %v382, %v383
    %v385 = vsel %vm94, %v266, 0.0
    %v386 = vrot.slane %v385, 4
    %v387 = vadd.f32 %v385, %v386
    %v388 = vrot.slane %v387, 2
    %v389 = vadd.f32 %v387, %v388
    %v390 = vrot.slane %v389, 1
    %v391 = vadd.f32 %v389, %v390
    %v392 = vmul.f32 %v384, %v375
    %v393 = vmul.f32 %v391, %v375
    %vm396 = vcmask 1041409
    %v397 = vsel %vm396, %v393, %v392
    %v401 = vsel %vm396, %v377, %v376
    %402 = vrot.lane.b32.xlu0 %v401, 32
    %v403 = vpop.permute.xlu0 %402
    %v405 = vsel %vm94, %v397, %v403
    %v406 = vlaneseq
    %v407 = vshrl.u32 %v406, 7
    %v408 = vsub.s32 0, %v407
    %v409 = vrot.slane %v88, %v408
    %vm410 = vcmask 523264
    %v412 = vsel %vm410, %v405, 0
    %414 = vmatprep.subr.mxu0 0.0
    %415 = vmatpush1.msra.mxu0 %v74
    %416 = vmatprep.subr.mxu0 0.0
    %417 = vmatpush1.msra.mxu0 %v75
    %418 = vmatprep.subr.mxu0 0.0
    %419 = vmatpush1.msra.mxu0 %v76
    %420 = vmatprep.subr.mxu0 0.0
    %421 = vmatpush1.msra.mxu0 %v77
    %422 = vmatprep.subr.mxu0 0.0
    %423 = vmatpush1.msra.mxu0 %v78
    %424 = vmatprep.subr.mxu0 0.0
    %425 = vmatpush1.msra.mxu0 %v79
    %426 = vmatprep.subr.mxu0 0.0
    %427 = vmatpush1.msra.mxu0 %v80
    %428 = vmatprep.subr.mxu0 0.0
    %429 = vmatpush1.msra.mxu0 %v81
    %430 = vmatprep.subr.mxu0 0.0
    %431 = vmatpush1.msra.mxu0 0.0
    %432 = vmatprep.subr.mxu0 0.0
    %433 = vmatpush1.msra.mxu0 0.0
    %434 = vmatprep.subr.mxu0 0.0
    %435 = vmatpush1.msra.mxu0 0.0
    %436 = vmatprep.subr.mxu0 0.0
    %437 = vmatpush1.msra.mxu0 0.0
    %438 = vmatprep.subr.mxu0 0.0
    %439 = vmatpush1.msra.mxu0 0.0
    %440 = vmatprep.subr.mxu0 0.0
    %441 = vmatpush1.msra.mxu0 0.0
    %442 = vmatprep.subr.mxu0 0.0
    %443 = vmatpush1.msra.mxu0 0.0
    %444 = vmatprep.subr.mxu0 0.0
    %445 = vmatpush1.msra.mxu0 0.0
    %446 = vmatprep.subr.mxu0 0.0
    %447 = vmatpush1.msra.mxu0 0.0
    %448 = vmatprep.subr.mxu0 0.0
    %449 = vmatpush1.msra.mxu0 0.0
    %450 = vmatprep.subr.mxu0 0.0
    %451 = vmatpush1.msra.mxu0 0.0
    %452 = vmatprep.subr.mxu0 0.0
    %453 = vmatpush1.msra.mxu0 0.0
    %454 = vmatprep.subr.mxu0 0.0
    %455 = vmatpush1.msra.mxu0 0.0
    %456 = vmatprep.subr.mxu0 0.0
    %457 = vmatpush1.msra.mxu0 0.0
    %458 = vmatprep.subr.mxu0 0.0
    %459 = vmatpush1.msra.mxu0 0.0
    %460 = vmatprep.subr.mxu0 0.0
    %461 = vmatpush1.msra.mxu0 0.0
    %462 = vmatprep.subr.mxu0 0.0
    %463 = vmatpush1.msra.mxu0 0.0
    %464 = vmatprep.subr.mxu0 0.0
    %465 = vmatpush1.msra.mxu0 0.0
    %466 = vmatprep.subr.mxu0 0.0
    %467 = vmatpush1.msra.mxu0 0.0
    %468 = vmatprep.subr.mxu0 0.0
    %469 = vmatpush1.msra.mxu0 0.0
    %470 = vmatprep.subr.mxu0 0.0
    %471 = vmatpush1.msra.mxu0 0.0
    %472 = vmatprep.subr.mxu0 0.0
    %473 = vmatpush1.msra.mxu0 0.0
    %474 = vmatprep.subr.mxu0 0.0
    %475 = vmatpush1.msra.mxu0 0.0
    %476 = vmatprep.subr.mxu0 0.0
    %477 = vmatpush1.msra.mxu0 0.0
    %478 = vmatprep.mubr.f32.mxu0 0.0
    %479 = vmatmul.mubr.f32.gmra.mrb[0].mxu0 %v412
    %v480 = vpop.f32.mrb[0].mxu0
    %v481 = vadd.f32 %v409, %v480
    %v482 = vpop.f32.mrb[0].mxu0
    %483 = vdwg.mxu0
    %v484 = vtanh.pop %v481
    %v485 = vlaneseq
    %v486 = vshrl.u32 %v485, 7
    %v487 = vsub.s32 0, %v486
    %v488 = vrot.slane %v89, %v487
    %v490 = vsel %vm94, %v484, 0
    %492 = vmatprep.subr.mxu0 0.0
    %493 = vmatpush1.msra.mxu0 %v82
    %494 = vmatprep.subr.mxu0 0.0
    %495 = vmatpush1.msra.mxu0 %v83
    %496 = vmatprep.subr.mxu0 0.0
    %497 = vmatpush1.msra.mxu0 %v84
    %498 = vmatprep.subr.mxu0 0.0
    %499 = vmatpush1.msra.mxu0 %v85
    %500 = vmatprep.subr.mxu0 0.0
    %501 = vmatpush1.msra.mxu0 0.0
    %502 = vmatprep.subr.mxu0 0.0
    %503 = vmatpush1.msra.mxu0 0.0
    %504 = vmatprep.subr.mxu0 0.0
    %505 = vmatpush1.msra.mxu0 0.0
    %506 = vmatprep.subr.mxu0 0.0
    %507 = vmatpush1.msra.mxu0 0.0
    %508 = vmatprep.subr.mxu0 0.0
    %509 = vmatpush1.msra.mxu0 0.0
    %510 = vmatprep.subr.mxu0 0.0
    %511 = vmatpush1.msra.mxu0 0.0
    %512 = vmatprep.subr.mxu0 0.0
    %513 = vmatpush1.msra.mxu0 0.0
    %514 = vmatprep.subr.mxu0 0.0
    %515 = vmatpush1.msra.mxu0 0.0
    %516 = vmatprep.subr.mxu0 0.0
    %517 = vmatpush1.msra.mxu0 0.0
    %518 = vmatprep.subr.mxu0 0.0
    %519 = vmatpush1.msra.mxu0 0.0
    %520 = vmatprep.subr.mxu0 0.0
    %521 = vmatpush1.msra.mxu0 0.0
    %522 = vmatprep.subr.mxu0 0.0
    %523 = vmatpush1.msra.mxu0 0.0
    %524 = vmatprep.subr.mxu0 0.0
    %525 = vmatpush1.msra.mxu0 0.0
    %526 = vmatprep.subr.mxu0 0.0
    %527 = vmatpush1.msra.mxu0 0.0
    %528 = vmatprep.subr.mxu0 0.0
    %529 = vmatpush1.msra.mxu0 0.0
    %530 = vmatprep.subr.mxu0 0.0
    %531 = vmatpush1.msra.mxu0 0.0
    %532 = vmatprep.subr.mxu0 0.0
    %533 = vmatpush1.msra.mxu0 0.0
    %534 = vmatprep.subr.mxu0 0.0
    %535 = vmatpush1.msra.mxu0 0.0
    %536 = vmatprep.subr.mxu0 0.0
    %537 = vmatpush1.msra.mxu0 0.0
    %538 = vmatprep.subr.mxu0 0.0
    %539 = vmatpush1.msra.mxu0 0.0
    %540 = vmatprep.subr.mxu0 0.0
    %541 = vmatpush1.msra.mxu0 0.0
    %542 = vmatprep.subr.mxu0 0.0
    %543 = vmatpush1.msra.mxu0 0.0
    %544 = vmatprep.subr.mxu0 0.0
    %545 = vmatpush1.msra.mxu0 0.0
    %546 = vmatprep.subr.mxu0 0.0
    %547 = vmatpush1.msra.mxu0 0.0
    %548 = vmatprep.subr.mxu0 0.0
    %549 = vmatpush1.msra.mxu0 0.0
    %550 = vmatprep.subr.mxu0 0.0
    %551 = vmatpush1.msra.mxu0 0.0
    %552 = vmatprep.subr.mxu0 0.0
    %553 = vmatpush1.msra.mxu0 0.0
    %554 = vmatprep.subr.mxu0 0.0
    %555 = vmatpush1.msra.mxu0 0.0
    %556 = vmatprep.mubr.f32.mxu0 0.0
    %557 = vmatmul.mubr.f32.gmra.mrb[0].mxu0 %v490
    %v558 = vpop.f32.mrb[0].mxu0
    %v559 = vadd.f32 %v488, %v558
    %v560 = vpop.f32.mrb[0].mxu0
    %561 = vdwg.mxu0
    %vm562 = vcmask 123904
    %v563 = vsel %vm562, %v559, -inf
    %564 = vmax.xlane.f32.xlu0 %v563
    %v565 = vpop.xlane.xlu0 %564
    %v566 = vsub.f32 %v559, %v565
    %v567 = vmul.f32 %v566, 1.442695
    %v568 = vpow.pop %v567
    %v569 = vsel %vm562, %v568, 0.0
    %570 = vadd.xlane.f32.xlu0 %v569
    %v571 = vpop.xlane.xlu0 %570
    %v572 = vlog2.pop %v571
    %v573 = vmul.f32 %v572, 0.6931472
    %v574 = vsub.f32 %v566, %v573
    %575 = vst.msk [vmem:[#allocation8] sm:$0x3] %vm562, %v574
    // Predicated region
    $region26: #{tpu_custom_call.1} parent=1 // pred_check
      _
    $region27: #{tpu_custom_call.1} parent=1 // pred_check_branch
      %577 = sbr.rel (0) target = $region29
    $region28: #{tpu_custom_call.1} parent=1 // pred_region
      %s579 = ssub.s32 32, 32
      %580 = vsyncadd [#allocation4], %s579
      %s582 = sshll.u32 [#allocation8], 4
      %s583 = int_to_ptr.vmem [resolvable:$true] %s582
      %585 = dma.vmem_to_hbm [thread:$0]  %s583, 32, %s3, [#allocation4]
    $region29: #{tpu_custom_call.1} parent=1 // pred_fallthru
      _
    // Predicated region
    $region30: #{tpu_custom_call.1} parent=1 // pred_check
      _
    $region31: #{tpu_custom_call.1} parent=1 // pred_check_branch
      %587 = sbr.rel (0) target = $region33
    $region32: #{tpu_custom_call.1} parent=1 // pred_region
      %588 = dma.done [#allocation4], 32
    $region33: #{tpu_custom_call.1} parent=1 // pred_fallthru
      _
    %589 = vsyncpa [#allocation3], 1
    %590 = vsyncpa [#allocation6], 1
    %591 = vsyncpa [#allocation4], 1

</llo_original>
